<compile_context>
chip_gen: v7x
topology: tpu7x:2x2x1
jax: 0.10.0
libtpu: 0.0.40
codegen_flags: <defaults>
</compile_context>

<pallas_src>
import jax
import jax.numpy as jnp
from jax.experimental import pallas as pl
from jax.experimental.pallas import tpu as pltpu


# ----------------------------- configuration ------------------------------ #
CARD_EMB_DIM   = 32          # mpm_args.card_emb_dim
N_CARDS_BOARD  = 5           # env_bldr.N_CARDS_BOARD
N_HOLE_CARDS   = 2
N_ACTIONS      = 12          # env_bldr.N_ACTIONS
N_CARDS_TOTAL  = 52
HIDDEN_UNITS   = 64          # mpm_args.hidden_units
LN_EPS         = 1e-5

INPUT_SIZE = CARD_EMB_DIM * (1 + N_CARDS_BOARD) + N_ACTIONS   # 204

# ----- TPU-friendly padded layout constants -----
N_CARD_ROWS   = 64                              # card table rows 53 -> 64 (zero-padded)
N_CARD_SLOTS  = N_HOLE_CARDS + N_CARDS_BOARD    # 7 index slots per row
N_EMB_BLOCKS  = 1 + N_CARDS_BOARD               # hole-sum block + 5 board blocks
ONEHOT_W      = N_EMB_BLOCKS * N_CARD_ROWS      # 384
EMB_W         = N_EMB_BLOCKS * CARD_EMB_DIM     # 192
ACT_PAD       = 64                              # action features padded 12 -> 64
PAD_K         = EMB_W + ACT_PAD                 # 256 (padded contraction dim)
HIDDEN_PAD    = 128                             # hidden width padded 64 -> 128
MAX_BATCH_TILE = 512                            # rows per grid step
# which embedding block each card slot feeds (both hole cards sum into block 0)
CARD_SLOT_SEG = (0, 0, 1, 2, 3, 4, 5)


def _round_up(x, m):
    return ((x + m - 1) // m) * m


# ------------------------------ Pallas kernel ------------------------------ #
def _mpm_flat_kernel(idx_ref, act_ref, gamma_ref, beta_ref, emb_tbl_ref,
                     w1_ref, b1_ref, w2_ref, b2_ref, o_ref):
    """Fused embed -> concat -> LayerNorm -> Linear -> ReLU -> Linear -> ReLU."""
    tb = idx_ref.shape[0]

    # ---- card-embedding gather as a one-hot-counts MXU matmul ----
    idx = idx_ref[...]                                       # (TB, 7) int32
    idx = jnp.where(idx < 0, N_CARD_ROWS - 1, idx)           # -1 -> zero row
    lane = jax.lax.broadcasted_iota(jnp.int32, (tb, ONEHOT_W), 1)
    onehot = jnp.zeros((tb, ONEHOT_W), jnp.float32)
    for slot, seg in enumerate(CARD_SLOT_SEG):
        col = idx[:, slot:slot + 1] + (seg * N_CARD_ROWS)    # (TB, 1)
        onehot = onehot + (lane == col).astype(jnp.float32)
    emb = jnp.dot(onehot.astype(jnp.bfloat16), emb_tbl_ref[...],
                  preferred_element_type=jnp.float32)        # (TB, 192) f32

    # ---- padded feature row: [emb(192) | act(12)+zeros | zeros] = 256 ----
    x = jnp.concatenate([emb, act_ref[...]], axis=-1)        # (TB, 256)

    # ---- LayerNorm over exactly the 204 real features (pads are zero) ----
    inv_n = 1.0 / float(INPUT_SIZE)
    mean = jnp.sum(x, axis=-1, keepdims=True) * inv_n
    var = jnp.maximum(
        jnp.sum(x * x, axis=-1, keepdims=True) * inv_n - mean * mean, 0.0)
    # gamma/beta are zero on padded columns => y is exactly 0 there, and the
    # padded rows of w1 are zero, so padding never leaks into the result.
    y = (x - mean) * jax.lax.rsqrt(var + LN_EPS) * gamma_ref[...] + beta_ref[...]

    # ---- main_net: Linear -> ReLU -> Linear -> ReLU (bf16 MXU, f32 acc) ----
    h1 = jnp.dot(y.astype(jnp.bfloat16), w1_ref[...],
                 preferred_element_type=jnp.float32)
    h1 = jnp.maximum(h1 + b1_ref[...], 0.0)                  # (TB, 128)
    h2 = jnp.dot(h1.astype(jnp.bfloat16), w2_ref[...],
                 preferred_element_type=jnp.float32)
    h2 = jnp.maximum(h2 + b2_ref[...], 0.0)                  # (TB, 128)

    o_ref[...] = h2.astype(o_ref.dtype)


# ------------------------------ JAX wrapper --------------------------------- #
def prepare_params(card_table, ln_gamma, ln_beta, w1, b1, w2, b2):
    """Repack/pad the module parameters into the TPU-friendly kernel layout."""
    # Card table padded to 64 rows; rows >= 52 are the zero "no card" rows.
    ct = jnp.zeros((N_CARD_ROWS, CARD_EMB_DIM), jnp.float32)
    ct = ct.at[:N_CARDS_TOTAL, :].set(
        card_table[:N_CARDS_TOTAL].astype(jnp.float32))

    # Block-diagonal embedding matrix: block 0 = hole-card sum, blocks 1..5 =
    # the five board-card slots.  (384, 192) bf16, resident in VMEM.
    emb_tbl = jnp.zeros((ONEHOT_W, EMB_W), jnp.float32)
    for blk in range(N_EMB_BLOCKS):
        emb_tbl = emb_tbl.at[blk * N_CARD_ROWS:(blk + 1) * N_CARD_ROWS,
                             blk * CARD_EMB_DIM:(blk + 1) * CARD_EMB_DIM].set(ct)
    emb_tbl = emb_tbl.astype(jnp.bfloat16)

    def pad_row(v, width):
        v = jnp.asarray(v, jnp.float32).reshape(1, -1)
        return jnp.pad(v, ((0, 0), (0, width - v.shape[1])))

    gamma_pad = pad_row(ln_gamma, PAD_K)        # zeros on padded features
    beta_pad = pad_row(ln_beta, PAD_K)
    b1_pad = pad_row(b1, HIDDEN_PAD)
    b2_pad = pad_row(b2, HIDDEN_PAD)

    w1_pad = jnp.zeros((PAD_K, HIDDEN_PAD), jnp.float32)
    w1_pad = w1_pad.at[:INPUT_SIZE, :HIDDEN_UNITS].set(
        jnp.asarray(w1, jnp.float32)).astype(jnp.bfloat16)
    w2_pad = jnp.zeros((HIDDEN_PAD, HIDDEN_PAD), jnp.float32)
    w2_pad = w2_pad.at[:HIDDEN_UNITS, :HIDDEN_UNITS].set(
        jnp.asarray(w2, jnp.float32)).astype(jnp.bfloat16)

    return (gamma_pad, beta_pad, emb_tbl, w1_pad, b1_pad, w2_pad, b2_pad)


@jax.jit
def mpm_flat_forward(hole_idx, board_idx, action_feats, prepared):
    """hole_idx (B,2) int32, board_idx (B,5) int32 (-1 = no card),
    action_feats (B,12) f32.  Returns (B, HIDDEN_UNITS) f32."""
    gamma_pad, beta_pad, emb_tbl, w1_pad, b1_pad, w2_pad, b2_pad = prepared
    B = hole_idx.shape[0]

    card_idx = jnp.concatenate([hole_idx, board_idx], axis=-1).astype(jnp.int32)
    act = jnp.zeros((B, ACT_PAD), jnp.float32)
    act = act.at[:, :N_ACTIONS].set(action_feats.astype(jnp.float32))

    tb = min(MAX_BATCH_TILE, _round_up(B, 8))
    b_pad = _round_up(B, tb)
    if b_pad != B:
        card_idx = jnp.pad(card_idx, ((0, b_pad - B), (0, 0)))
        act = jnp.pad(act, ((0, b_pad - B), (0, 0)))

    out = pl.pallas_call(
        _mpm_flat_kernel,
        out_shape=jax.ShapeDtypeStruct((b_pad, HIDDEN_PAD), jnp.float32),
        grid=(b_pad // tb,),
        in_specs=[
            pl.BlockSpec((tb, N_CARD_SLOTS), lambda i: (i, 0)),   # card indices
            pl.BlockSpec((tb, ACT_PAD), lambda i: (i, 0)),        # action feats
            pl.BlockSpec((1, PAD_K), lambda i: (0, 0)),           # LN gamma
            pl.BlockSpec((1, PAD_K), lambda i: (0, 0)),           # LN beta
            pl.BlockSpec((ONEHOT_W, EMB_W), lambda i: (0, 0)),    # emb table
            pl.BlockSpec((PAD_K, HIDDEN_PAD), lambda i: (0, 0)),  # w1
            pl.BlockSpec((1, HIDDEN_PAD), lambda i: (0, 0)),      # b1
            pl.BlockSpec((HIDDEN_PAD, HIDDEN_PAD), lambda i: (0, 0)),  # w2
            pl.BlockSpec((1, HIDDEN_PAD), lambda i: (0, 0)),      # b2
        ],
        out_specs=pl.BlockSpec((tb, HIDDEN_PAD), lambda i: (i, 0)),
        compiler_params=pltpu.CompilerParams(
            dimension_semantics=("parallel",)),
    )(card_idx, act, gamma_pad, beta_pad, emb_tbl, w1_pad, b1_pad, w2_pad,
      b2_pad)

    return out[:B, :HIDDEN_UNITS]


# ------------------------- params / pure-JAX reference ---------------------- #
def init_params(key):
    """Deterministic synthetic parameters (shapes from the module __init__)."""
    ks = jax.random.split(key, 6)
    card_table = jax.random.normal(ks[0], (N_CARDS_TOTAL, CARD_EMB_DIM),
                                   jnp.float32) * 0.1
    card_table = jnp.concatenate(
        [card_table, jnp.zeros((1, CARD_EMB_DIM), jnp.float32)], axis=0)

    ln_gamma = jnp.ones((1, INPUT_SIZE), jnp.float32)
    ln_beta = jnp.zeros((1, INPUT_SIZE), jnp.float32)

    w1 = jax.random.normal(ks[1], (INPUT_SIZE, HIDDEN_UNITS),
                           jnp.float32) * (1.0 / jnp.sqrt(INPUT_SIZE))
    b1 = jax.random.normal(ks[2], (1, HIDDEN_UNITS), jnp.float32) * 0.01
    w2 = jax.random.normal(ks[3], (HIDDEN_UNITS, HIDDEN_UNITS),
                           jnp.float32) * (1.0 / jnp.sqrt(HIDDEN_UNITS))
    b2 = jax.random.normal(ks[4], (1, HIDDEN_UNITS), jnp.float32) * 0.01
    return card_table, ln_gamma, ln_beta, w1, b1, w2, b2


def reference_forward(card_table, hole_idx, board_idx, action_feats,
                      ln_gamma, ln_beta, w1, b1, w2, b2):
    """Pure-JAX f32 reference with the original module semantics."""
    def lookup(idx):
        idx = jnp.where(idx < 0, N_CARDS_TOTAL, idx)          # -1 -> zero row
        return jnp.take(card_table, idx, axis=0)

    hole_emb = lookup(hole_idx).sum(axis=1)                   # (B, 32)
    board_emb = lookup(board_idx).reshape(hole_idx.shape[0], -1)   # (B, 160)
    x = jnp.concatenate(
        [hole_emb, board_emb, action_feats.astype(jnp.float32)], axis=-1)

    mean = jnp.mean(x, axis=-1, keepdims=True)
    var = jnp.mean((x - mean) ** 2, axis=-1, keepdims=True)
    y = (x - mean) * jax.lax.rsqrt(var + LN_EPS) * ln_gamma + ln_beta
    h1 = jnp.maximum(y @ w1 + b1, 0.0)
    return jnp.maximum(h1 @ w2 + b2, 0.0)


# --------------------------------- main ------------------------------------- #
if __name__ == "__main__":
    key = jax.random.PRNGKey(0)
    k_param, k_hole, k_board, k_act = jax.random.split(key, 4)

    B = 8
    card_table, ln_gamma, ln_beta, w1, b1, w2, b2 = init_params(k_param)
    prepared = prepare_params(card_table, ln_gamma, ln_beta, w1, b1, w2, b2)

    hole_idx = jax.random.randint(k_hole, (B, N_HOLE_CARDS), 0, N_CARDS_TOTAL)
    board_idx = jax.random.randint(k_board, (B, N_CARDS_BOARD), -1,
                                   N_CARDS_TOTAL)      # -1 = card not dealt
    action_feats = jax.random.uniform(k_act, (B, N_ACTIONS), jnp.float32)

    out = mpm_flat_forward(hole_idx, board_idx, action_feats, prepared)
    out = jax.block_until_ready(out)

    ref = reference_forward(card_table, hole_idx, board_idx, action_feats,
                            ln_gamma, ln_beta, w1, b1, w2, b2)

    assert out.shape == (B, HIDDEN_UNITS)
    # bf16 matmul inputs (f32 accumulation) vs the pure-f32 reference:
    # loosened tolerance per review.
    max_err = float(jnp.max(jnp.abs(out - ref)))
    assert jnp.allclose(out, ref, atol=5e-2, rtol=5e-2), max_err

    print("KERNEL_OK")
</pallas_src>

<mosaic_0001>
module attributes {stable_mosaic.version = 11 : i64} {
  func.func @_mpm_flat_kernel(%arg0: i32, %arg1: memref<8x7xi32, #tpu.memory_space<vmem>>, %arg2: memref<8x64xf32, #tpu.memory_space<vmem>>, %arg3: memref<1x256xf32, #tpu.memory_space<vmem>>, %arg4: memref<1x256xf32, #tpu.memory_space<vmem>>, %arg5: memref<384x192xbf16, #tpu.memory_space<vmem>>, %arg6: memref<256x128xbf16, #tpu.memory_space<vmem>>, %arg7: memref<1x128xf32, #tpu.memory_space<vmem>>, %arg8: memref<128x128xbf16, #tpu.memory_space<vmem>>, %arg9: memref<1x128xf32, #tpu.memory_space<vmem>>, %arg10: memref<8x128xf32, #tpu.memory_space<vmem>>) attributes {dimension_semantics = [#tpu.dimension_semantics<parallel>], iteration_bounds = array<i64: 1>, scalar_prefetch = 0 : i64, scratch_operands = 0 : i64, tpu.core_type = #tpu.core_type<tc>, window_params = [{transform_indices = @transform_0, window_bounds = array<i64: 8, 7>}, {transform_indices = @transform_1, window_bounds = array<i64: 8, 64>}, {pipeline_mode = #tpu.pipeline_mode<synchronous>, transform_indices = @transform_2, window_bounds = array<i64: 1, 256>}, {pipeline_mode = #tpu.pipeline_mode<synchronous>, transform_indices = @transform_3, window_bounds = array<i64: 1, 256>}, {pipeline_mode = #tpu.pipeline_mode<synchronous>, transform_indices = @transform_4, window_bounds = array<i64: 384, 192>}, {pipeline_mode = #tpu.pipeline_mode<synchronous>, transform_indices = @transform_5, window_bounds = array<i64: 256, 128>}, {pipeline_mode = #tpu.pipeline_mode<synchronous>, transform_indices = @transform_6, window_bounds = array<i64: 1, 128>}, {pipeline_mode = #tpu.pipeline_mode<synchronous>, transform_indices = @transform_7, window_bounds = array<i64: 128, 128>}, {pipeline_mode = #tpu.pipeline_mode<synchronous>, transform_indices = @transform_8, window_bounds = array<i64: 1, 128>}, {transform_indices = @transform_9, window_bounds = array<i64: 8, 128>}]} {
    %c0 = arith.constant 0 : index
    %c0_0 = arith.constant 0 : index
    %0 = vector.load %arg1[%c0, %c0_0] : memref<8x7xi32, #tpu.memory_space<vmem>>, vector<8x7xi32>
    %c0_i32 = arith.constant 0 : i32
    %1 = vector.broadcast %c0_i32 : i32 to vector<8x7xi32>
    %2 = arith.cmpi slt, %0, %1 : vector<8x7xi32>
    %c63_i32 = arith.constant 63 : i32
    %3 = vector.broadcast %c63_i32 : i32 to vector<8x7xi32>
    %4 = arith.select %2, %3, %0 : vector<8x7xi1>, vector<8x7xi32>
    %5 = tpu.iota {dimensions = array<i32: 1>} : vector<8x384xi32>
    %cst = arith.constant 0.000000e+00 : f32
    %6 = vector.broadcast %cst : f32 to vector<8x384xf32>
    %7 = vector.extract_strided_slice %4 {offsets = [0, 0], sizes = [8, 1], strides = [1, 1]} : vector<8x7xi32> to vector<8x1xi32>
    %c0_i32_1 = arith.constant 0 : i32
    %8 = vector.broadcast %c0_i32_1 : i32 to vector<8x1xi32>
    %9 = arith.addi %7, %8 : vector<8x1xi32>
    %10 = vector.broadcast %9 : vector<8x1xi32> to vector<8x384xi32>
    %11 = arith.cmpi eq, %5, %10 : vector<8x384xi32>
    %12 = arith.extui %11 : vector<8x384xi1> to vector<8x384xi32>
    %13 = arith.sitofp %12 : vector<8x384xi32> to vector<8x384xf32>
    %14 = arith.addf %6, %13 : vector<8x384xf32>
    %15 = vector.extract_strided_slice %4 {offsets = [0, 1], sizes = [8, 1], strides = [1, 1]} : vector<8x7xi32> to vector<8x1xi32>
    %c0_i32_2 = arith.constant 0 : i32
    %16 = vector.broadcast %c0_i32_2 : i32 to vector<8x1xi32>
    %17 = arith.addi %15, %16 : vector<8x1xi32>
    %18 = vector.broadcast %17 : vector<8x1xi32> to vector<8x384xi32>
    %19 = arith.cmpi eq, %5, %18 : vector<8x384xi32>
    %20 = arith.extui %19 : vector<8x384xi1> to vector<8x384xi32>
    %21 = arith.sitofp %20 : vector<8x384xi32> to vector<8x384xf32>
    %22 = arith.addf %14, %21 : vector<8x384xf32>
    %23 = vector.extract_strided_slice %4 {offsets = [0, 2], sizes = [8, 1], strides = [1, 1]} : vector<8x7xi32> to vector<8x1xi32>
    %c64_i32 = arith.constant 64 : i32
    %24 = vector.broadcast %c64_i32 : i32 to vector<8x1xi32>
    %25 = arith.addi %23, %24 : vector<8x1xi32>
    %26 = vector.broadcast %25 : vector<8x1xi32> to vector<8x384xi32>
    %27 = arith.cmpi eq, %5, %26 : vector<8x384xi32>
    %28 = arith.extui %27 : vector<8x384xi1> to vector<8x384xi32>
    %29 = arith.sitofp %28 : vector<8x384xi32> to vector<8x384xf32>
    %30 = arith.addf %22, %29 : vector<8x384xf32>
    %31 = vector.extract_strided_slice %4 {offsets = [0, 3], sizes = [8, 1], strides = [1, 1]} : vector<8x7xi32> to vector<8x1xi32>
    %c128_i32 = arith.constant 128 : i32
    %32 = vector.broadcast %c128_i32 : i32 to vector<8x1xi32>
    %33 = arith.addi %31, %32 : vector<8x1xi32>
    %34 = vector.broadcast %33 : vector<8x1xi32> to vector<8x384xi32>
    %35 = arith.cmpi eq, %5, %34 : vector<8x384xi32>
    %36 = arith.extui %35 : vector<8x384xi1> to vector<8x384xi32>
    %37 = arith.sitofp %36 : vector<8x384xi32> to vector<8x384xf32>
    %38 = arith.addf %30, %37 : vector<8x384xf32>
    %39 = vector.extract_strided_slice %4 {offsets = [0, 4], sizes = [8, 1], strides = [1, 1]} : vector<8x7xi32> to vector<8x1xi32>
    %c192_i32 = arith.constant 192 : i32
    %40 = vector.broadcast %c192_i32 : i32 to vector<8x1xi32>
    %41 = arith.addi %39, %40 : vector<8x1xi32>
    %42 = vector.broadcast %41 : vector<8x1xi32> to vector<8x384xi32>
    %43 = arith.cmpi eq, %5, %42 : vector<8x384xi32>
    %44 = arith.extui %43 : vector<8x384xi1> to vector<8x384xi32>
    %45 = arith.sitofp %44 : vector<8x384xi32> to vector<8x384xf32>
    %46 = arith.addf %38, %45 : vector<8x384xf32>
    %47 = vector.extract_strided_slice %4 {offsets = [0, 5], sizes = [8, 1], strides = [1, 1]} : vector<8x7xi32> to vector<8x1xi32>
    %c256_i32 = arith.constant 256 : i32
    %48 = vector.broadcast %c256_i32 : i32 to vector<8x1xi32>
    %49 = arith.addi %47, %48 : vector<8x1xi32>
    %50 = vector.broadcast %49 : vector<8x1xi32> to vector<8x384xi32>
    %51 = arith.cmpi eq, %5, %50 : vector<8x384xi32>
    %52 = arith.extui %51 : vector<8x384xi1> to vector<8x384xi32>
    %53 = arith.sitofp %52 : vector<8x384xi32> to vector<8x384xf32>
    %54 = arith.addf %46, %53 : vector<8x384xf32>
    %55 = vector.extract_strided_slice %4 {offsets = [0, 6], sizes = [8, 1], strides = [1, 1]} : vector<8x7xi32> to vector<8x1xi32>
    %c320_i32 = arith.constant 320 : i32
    %56 = vector.broadcast %c320_i32 : i32 to vector<8x1xi32>
    %57 = arith.addi %55, %56 : vector<8x1xi32>
    %58 = vector.broadcast %57 : vector<8x1xi32> to vector<8x384xi32>
    %59 = arith.cmpi eq, %5, %58 : vector<8x384xi32>
    %60 = arith.extui %59 : vector<8x384xi1> to vector<8x384xi32>
    %61 = arith.sitofp %60 : vector<8x384xi32> to vector<8x384xf32>
    %62 = arith.addf %54, %61 : vector<8x384xf32>
    %63 = arith.truncf %62 : vector<8x384xf32> to vector<8x384xbf16>
    %c0_3 = arith.constant 0 : index
    %c0_4 = arith.constant 0 : index
    %64 = vector.load %arg5[%c0_3, %c0_4] : memref<384x192xbf16, #tpu.memory_space<vmem>>, vector<384x192xbf16>
    %cst_5 = arith.constant dense<0.000000e+00> : vector<8x192xf32>
    %65 = tpu.matmul %63, %64, %cst_5 {dimension_numbers = #tpu.dot_dimension_numbers<[1], [0], [0], [1], [0, 0, 1, 1], [], []>} : vector<8x384xbf16>, vector<384x192xbf16>, vector<8x192xf32> -> vector<8x192xf32>
    %c0_6 = arith.constant 0 : index
    %c0_7 = arith.constant 0 : index
    %66 = vector.load %arg2[%c0_6, %c0_7] : memref<8x64xf32, #tpu.memory_space<vmem>>, vector<8x64xf32>
    %67 = tpu.concatenate %65, %66 in 1 : vector<8x192xf32>, vector<8x64xf32> -> vector<8x256xf32>
    %cst_8 = arith.constant dense<0.000000e+00> : vector<8xf32>
    %68 = vector.multi_reduction <add>, %67, %cst_8 [1] : vector<8x256xf32> to vector<8xf32>
    %69 = vector.shape_cast %68 : vector<8xf32> to vector<8x1xf32>
    %cst_9 = arith.constant 0.00490196096 : f32
    %70 = vector.broadcast %cst_9 : f32 to vector<8x1xf32>
    %71 = arith.mulf %69, %70 : vector<8x1xf32>
    %72 = arith.mulf %67, %67 : vector<8x256xf32>
    %cst_10 = arith.constant dense<0.000000e+00> : vector<8xf32>
    %73 = vector.multi_reduction <add>, %72, %cst_10 [1] : vector<8x256xf32> to vector<8xf32>
    %74 = vector.shape_cast %73 : vector<8xf32> to vector<8x1xf32>
    %cst_11 = arith.constant 0.00490196096 : f32
    %75 = vector.broadcast %cst_11 : f32 to vector<8x1xf32>
    %76 = arith.mulf %74, %75 : vector<8x1xf32>
    %77 = arith.mulf %71, %71 : vector<8x1xf32>
    %78 = arith.subf %76, %77 : vector<8x1xf32>
    %cst_12 = arith.constant 0.000000e+00 : f32
    %79 = vector.broadcast %cst_12 : f32 to vector<8x1xf32>
    %80 = arith.maximumf %78, %79 : vector<8x1xf32>
    %81 = vector.broadcast %71 : vector<8x1xf32> to vector<8x256xf32>
    %82 = arith.subf %67, %81 : vector<8x256xf32>
    %cst_13 = arith.constant 9.99999974E-6 : f32
    %83 = vector.broadcast %cst_13 : f32 to vector<8x1xf32>
    %84 = arith.addf %80, %83 : vector<8x1xf32>
    %85 = math.rsqrt %84 : vector<8x1xf32>
    %86 = vector.broadcast %85 : vector<8x1xf32> to vector<8x256xf32>
    %87 = arith.mulf %82, %86 : vector<8x256xf32>
    %c0_14 = arith.constant 0 : index
    %c0_15 = arith.constant 0 : index
    %88 = vector.load %arg3[%c0_14, %c0_15] : memref<1x256xf32, #tpu.memory_space<vmem>>, vector<1x256xf32>
    %89 = vector.broadcast %88 : vector<1x256xf32> to vector<8x256xf32>
    %90 = arith.mulf %87, %89 : vector<8x256xf32>
    %c0_16 = arith.constant 0 : index
    %c0_17 = arith.constant 0 : index
    %91 = vector.load %arg4[%c0_16, %c0_17] : memref<1x256xf32, #tpu.memory_space<vmem>>, vector<1x256xf32>
    %92 = vector.broadcast %91 : vector<1x256xf32> to vector<8x256xf32>
    %93 = arith.addf %90, %92 : vector<8x256xf32>
    %94 = arith.truncf %93 : vector<8x256xf32> to vector<8x256xbf16>
    %c0_18 = arith.constant 0 : index
    %c0_19 = arith.constant 0 : index
    %95 = vector.load %arg6[%c0_18, %c0_19] : memref<256x128xbf16, #tpu.memory_space<vmem>>, vector<256x128xbf16>
    %cst_20 = arith.constant dense<0.000000e+00> : vector<8x128xf32>
    %96 = tpu.matmul %94, %95, %cst_20 {dimension_numbers = #tpu.dot_dimension_numbers<[1], [0], [0], [1], [0, 0, 1, 1], [], []>} : vector<8x256xbf16>, vector<256x128xbf16>, vector<8x128xf32> -> vector<8x128xf32>
    %c0_21 = arith.constant 0 : index
    %c0_22 = arith.constant 0 : index
    %97 = vector.load %arg7[%c0_21, %c0_22] : memref<1x128xf32, #tpu.memory_space<vmem>>, vector<1x128xf32>
    %98 = vector.broadcast %97 : vector<1x128xf32> to vector<8x128xf32>
    %99 = arith.addf %96, %98 : vector<8x128xf32>
    %cst_23 = arith.constant 0.000000e+00 : f32
    %100 = vector.broadcast %cst_23 : f32 to vector<8x128xf32>
    %101 = arith.maximumf %99, %100 : vector<8x128xf32>
    %102 = arith.truncf %101 : vector<8x128xf32> to vector<8x128xbf16>
    %c0_24 = arith.constant 0 : index
    %c0_25 = arith.constant 0 : index
    %103 = vector.load %arg8[%c0_24, %c0_25] : memref<128x128xbf16, #tpu.memory_space<vmem>>, vector<128x128xbf16>
    %cst_26 = arith.constant dense<0.000000e+00> : vector<8x128xf32>
    %104 = tpu.matmul %102, %103, %cst_26 {dimension_numbers = #tpu.dot_dimension_numbers<[1], [0], [0], [1], [0, 0, 1, 1], [], []>} : vector<8x128xbf16>, vector<128x128xbf16>, vector<8x128xf32> -> vector<8x128xf32>
    %c0_27 = arith.constant 0 : index
    %c0_28 = arith.constant 0 : index
    %105 = vector.load %arg9[%c0_27, %c0_28] : memref<1x128xf32, #tpu.memory_space<vmem>>, vector<1x128xf32>
    %106 = vector.broadcast %105 : vector<1x128xf32> to vector<8x128xf32>
    %107 = arith.addf %104, %106 : vector<8x128xf32>
    %cst_29 = arith.constant 0.000000e+00 : f32
    %108 = vector.broadcast %cst_29 : f32 to vector<8x128xf32>
    %109 = arith.maximumf %107, %108 : vector<8x128xf32>
    %c0_30 = arith.constant 0 : index
    %c0_31 = arith.constant 0 : index
    %110 = vector.load %arg10[%c0_30, %c0_31] : memref<8x128xf32, #tpu.memory_space<vmem>>, vector<8x128xf32>
    tpu.vector_store %arg10[%c0_30, %c0_31], %109 {strides = array<i32>} : memref<8x128xf32, #tpu.memory_space<vmem>>, vector<8x128xf32>,
    return
  }
  func.func @transform_0(%arg0: i32) -> (i32, i32) {
    %c0_i32 = arith.constant 0 : i32
    %c0_i32_0 = arith.constant 0 : i32
    return %arg0, %c0_i32 : i32, i32
  }
  func.func @transform_1(%arg0: i32) -> (i32, i32) {
    %c0_i32 = arith.constant 0 : i32
    %c0_i32_0 = arith.constant 0 : i32
    return %arg0, %c0_i32 : i32, i32
  }
  func.func @transform_2(%arg0: i32) -> (i32, i32) {
    %c0_i32 = arith.constant 0 : i32
    %c0_i32_0 = arith.constant 0 : i32
    %c0_i32_1 = arith.constant 0 : i32
    return %c0_i32, %c0_i32_0 : i32, i32
  }
  func.func @transform_3(%arg0: i32) -> (i32, i32) {
    %c0_i32 = arith.constant 0 : i32
    %c0_i32_0 = arith.constant 0 : i32
    %c0_i32_1 = arith.constant 0 : i32
    return %c0_i32, %c0_i32_0 : i32, i32
  }
  func.func @transform_4(%arg0: i32) -> (i32, i32) {
    %c0_i32 = arith.constant 0 : i32
    %c0_i32_0 = arith.constant 0 : i32
    %c0_i32_1 = arith.constant 0 : i32
    return %c0_i32, %c0_i32_0 : i32, i32
  }
  func.func @transform_5(%arg0: i32) -> (i32, i32) {
    %c0_i32 = arith.constant 0 : i32
    %c0_i32_0 = arith.constant 0 : i32
    %c0_i32_1 = arith.constant 0 : i32
    return %c0_i32, %c0_i32_0 : i32, i32
  }
  func.func @transform_6(%arg0: i32) -> (i32, i32) {
    %c0_i32 = arith.constant 0 : i32
    %c0_i32_0 = arith.constant 0 : i32
    %c0_i32_1 = arith.constant 0 : i32
    return %c0_i32, %c0_i32_0 : i32, i32
  }
  func.func @transform_7(%arg0: i32) -> (i32, i32) {
    %c0_i32 = arith.constant 0 : i32
    %c0_i32_0 = arith.constant 0 : i32
    %c0_i32_1 = arith.constant 0 : i32
    return %c0_i32, %c0_i32_0 : i32, i32
  }
  func.func @transform_8(%arg0: i32) -> (i32, i32) {
    %c0_i32 = arith.constant 0 : i32
    %c0_i32_0 = arith.constant 0 : i32
    %c0_i32_1 = arith.constant 0 : i32
    return %c0_i32, %c0_i32_0 : i32, i32
  }
  func.func @transform_9(%arg0: i32) -> (i32, i32) {
    %c0_i32 = arith.constant 0 : i32
    %c0_i32_0 = arith.constant 0 : i32
    return %arg0, %c0_i32 : i32, i32
  }
}

</mosaic_0001>

<llo_original>
// kernel: mpm_flat_forward.1
$region0: #{mpm_flat_forward.1}
  #allocation0 [shape = 'u32[]', space=smem, size = 0x4, offset = 0x4, fixed_abs, tag = 'smem constant byte address 0x4 - core index']
  #allocation1 [shape = 'u32[144,128]{1,0:T(1,128)}', space=vmem, size = 0x12000, scoped, tag = 'internal scratch']
  %s0 = inlined_call_operand.vmem [shape: s32[8,7], index: 0, kind: input, shape index: {}]
  %s1 = inlined_call_operand.vmem [shape: f32[8,64], index: 1, kind: input, shape index: {}]
  %s2 = inlined_call_operand.vmem [shape: f32[1,256], index: 2, kind: input, shape index: {}]
  %s3 = inlined_call_operand.vmem [shape: f32[1,256], index: 3, kind: input, shape index: {}]
  %s4 = inlined_call_operand.vmem [shape: bf16[384,192], index: 4, kind: input, shape index: {}]
  %s5 = inlined_call_operand.vmem [shape: bf16[256,128], index: 5, kind: input, shape index: {}]
  %s6 = inlined_call_operand.vmem [shape: f32[1,128], index: 6, kind: input, shape index: {}]
  %s7 = inlined_call_operand.vmem [shape: bf16[128,128], index: 7, kind: input, shape index: {}]
  %s8 = inlined_call_operand.vmem [shape: f32[1,128], index: 8, kind: input, shape index: {}]
  %s9 = inlined_call_operand.hbm [shape: f32[8,128], index: 9, kind: output, shape index: {}]
  %s10 = sld [smem:[#allocation0]]
  $region46: #{mpm_flat_forward.1} parent=0
    _
  %s12 = ssub.s32 1, %s10
  %s13 = scalar_select 0, %s12, %s10
  $region1: #{mpm_flat_forward.1} parent=0
    #allocation2 [shape = 'u8[4096]{0}', space=vmem, size = 0x1000, scoped, tag = 'output window, operand 0, single buffered']
    #allocation3 [shape = 's32[1]{0}', space=sflag, size = 0x4, scoped, tag = 'scoped memory for mpm_flat_forward.1']
    %14 = vsyncpa [#allocation3], 0
    // Predicated region
    $region2: #{mpm_flat_forward.1} parent=1 // pred_check
      _
    $region3: #{mpm_flat_forward.1} parent=1 // pred_check_branch
      %16 = sbr.rel (0) target = $region5
    $region4: #{mpm_flat_forward.1} parent=1 // pred_region
      _
    $region5: #{mpm_flat_forward.1} parent=1 // pred_fallthru
      _
    // Predicated region
    $region6: #{mpm_flat_forward.1} parent=1 // pred_check
      _
    $region7: #{mpm_flat_forward.1} parent=1 // pred_check_branch
      %18 = sbr.rel (0) target = $region9
    $region8: #{mpm_flat_forward.1} parent=1 // pred_region
      _
    $region9: #{mpm_flat_forward.1} parent=1 // pred_fallthru
      _
    // Predicated region
    $region10: #{mpm_flat_forward.1} parent=1 // pred_check
      _
    $region11: #{mpm_flat_forward.1} parent=1 // pred_check_branch
      %20 = sbr.rel (0) target = $region13
    $region12: #{mpm_flat_forward.1} parent=1 // pred_region
      _
    $region13: #{mpm_flat_forward.1} parent=1 // pred_fallthru
      _
    // Predicated region
    $region14: #{mpm_flat_forward.1} parent=1 // pred_check
      _
    $region15: #{mpm_flat_forward.1} parent=1 // pred_check_branch
      %22 = sbr.rel (0) target = $region17
    $region16: #{mpm_flat_forward.1} parent=1 // pred_region
      _
    $region17: #{mpm_flat_forward.1} parent=1 // pred_fallthru
      _
    // Predicated region
    $region18: #{mpm_flat_forward.1} parent=1 // pred_check
      _
    $region19: #{mpm_flat_forward.1} parent=1 // pred_check_branch
      %24 = sbr.rel (0) target = $region21
    $region20: #{mpm_flat_forward.1} parent=1 // pred_region
      _
    $region21: #{mpm_flat_forward.1} parent=1 // pred_fallthru
      _
    // Predicated region
    $region22: #{mpm_flat_forward.1} parent=1 // pred_check
      _
    $region23: #{mpm_flat_forward.1} parent=1 // pred_check_branch
      %26 = sbr.rel (0) target = $region25
    $region24: #{mpm_flat_forward.1} parent=1 // pred_region
      _
    $region25: #{mpm_flat_forward.1} parent=1 // pred_fallthru
      _
    // Predicated region
    $region26: #{mpm_flat_forward.1} parent=1 // pred_check
      _
    $region27: #{mpm_flat_forward.1} parent=1 // pred_check_branch
      %28 = sbr.rel (0) target = $region29
    $region28: #{mpm_flat_forward.1} parent=1 // pred_region
      _
    $region29: #{mpm_flat_forward.1} parent=1 // pred_fallthru
      _
    // Predicated region
    $region30: #{mpm_flat_forward.1} parent=1 // pred_check
      _
    $region31: #{mpm_flat_forward.1} parent=1 // pred_check_branch
      %30 = sbr.rel (0) target = $region33
    $region32: #{mpm_flat_forward.1} parent=1 // pred_region
      _
    $region33: #{mpm_flat_forward.1} parent=1 // pred_fallthru
      _
    // Predicated region
    $region34: #{mpm_flat_forward.1} parent=1 // pred_check
      _
    $region35: #{mpm_flat_forward.1} parent=1 // pred_check_branch
      %32 = sbr.rel (0) target = $region37
    $region36: #{mpm_flat_forward.1} parent=1 // pred_region
      _
    $region37: #{mpm_flat_forward.1} parent=1 // pred_fallthru
      _
    %v34 = vld [vmem:[%s0] sm:$0xff]
    %vm35 = vcmp.lt.s32.totalorder %v34, 0
    %v36 = vsel %vm35, 63, %v34
    %v37 = vlaneseq
    %v38 = vand.u32 %v37, 127
    %v39 = vadd.s32 %v38, 128
    %v40 = vadd.s32 %v38, 256
    %41 = vset.pattern.permute.xlu0 0
    %42 = vperm.xlu0 %41, %v36
    %v43 = vpop.permute.xlu0 %42
    %vm44 = vcmp.eq.s32.totalorder %v38, %v43
    %vm45 = vcmp.eq.s32.totalorder %v39, %v43
    %vm46 = vcmp.eq.s32.totalorder %v40, %v43
    %v47 = vsel %vm44, 1, 0
    %v48 = vsel %vm45, 1, 0
    %v49 = vsel %vm46, 1, 0
    %v50 = vcvt.s32.f32 %v47
    %v51 = vcvt.s32.f32 %v48
    %v52 = vcvt.s32.f32 %v49
    %v53 = vadd.f32 %v50, 0.0
    %v54 = vadd.f32 %v51, 0.0
    %v55 = vadd.f32 %v52, 0.0
    %56 = vset.pattern.permute.xlu0 1
    %57 = vperm.xlu0 %56, %v36
    %v58 = vpop.permute.xlu0 %57
    %vm59 = vcmp.eq.s32.totalorder %v38, %v58
    %vm60 = vcmp.eq.s32.totalorder %v39, %v58
    %vm61 = vcmp.eq.s32.totalorder %v40, %v58
    %v62 = vsel %vm59, 1, 0
    %v63 = vsel %vm60, 1, 0
    %v64 = vsel %vm61, 1, 0
    %v65 = vcvt.s32.f32 %v62
    %v66 = vcvt.s32.f32 %v63
    %v67 = vcvt.s32.f32 %v64
    %v68 = vadd.f32 %v53, %v65
    %v69 = vadd.f32 %v54, %v66
    %v70 = vadd.f32 %v55, %v67
    %v71 = vadd.s32 %v36, 64
    %72 = vset.pattern.permute.xlu0 2
    %73 = vperm.xlu0 %72, %v71
    %v74 = vpop.permute.xlu0 %73
    %vm75 = vcmp.eq.s32.totalorder %v38, %v74
    %vm76 = vcmp.eq.s32.totalorder %v39, %v74
    %vm77 = vcmp.eq.s32.totalorder %v40, %v74
    %v78 = vsel %vm75, 1, 0
    %v79 = vsel %vm76, 1, 0
    %v80 = vsel %vm77, 1, 0
    %v81 = vcvt.s32.f32 %v78
    %v82 = vcvt.s32.f32 %v79
    %v83 = vcvt.s32.f32 %v80
    %v84 = vadd.f32 %v68, %v81
    %v85 = vadd.f32 %v69, %v82
    %v86 = vadd.f32 %v70, %v83
    %v87 = vadd.s32 %v36, 128
    %88 = vset.pattern.permute.xlu0 3
    %89 = vperm.xlu0 %88, %v87
    %v90 = vpop.permute.xlu0 %89
    %vm91 = vcmp.eq.s32.totalorder %v38, %v90
    %vm92 = vcmp.eq.s32.totalorder %v39, %v90
    %vm93 = vcmp.eq.s32.totalorder %v40, %v90
    %v94 = vsel %vm91, 1, 0
    %v95 = vsel %vm92, 1, 0
    %v96 = vsel %vm93, 1, 0
    %v97 = vcvt.s32.f32 %v94
    %v98 = vcvt.s32.f32 %v95
    %v99 = vcvt.s32.f32 %v96
    %v100 = vadd.f32 %v84, %v97
    %v101 = vadd.f32 %v85, %v98
    %v102 = vadd.f32 %v86, %v99
    %v103 = vadd.s32 %v36, 192
    %104 = vset.pattern.permute.xlu0 4
    %105 = vperm.xlu0 %104, %v103
    %v106 = vpop.permute.xlu0 %105
    %vm107 = vcmp.eq.s32.totalorder %v38, %v106
    %vm108 = vcmp.eq.s32.totalorder %v39, %v106
    %vm109 = vcmp.eq.s32.totalorder %v40, %v106
    %v110 = vsel %vm107, 1, 0
    %v111 = vsel %vm108, 1, 0
    %v112 = vsel %vm109, 1, 0
    %v113 = vcvt.s32.f32 %v110
    %v114 = vcvt.s32.f32 %v111
    %v115 = vcvt.s32.f32 %v112
    %v116 = vadd.f32 %v100, %v113
    %v117 = vadd.f32 %v101, %v114
    %v118 = vadd.f32 %v102, %v115
    %v119 = vadd.s32 %v36, 256
    %120 = vset.pattern.permute.xlu0 5
    %121 = vperm.xlu0 %120, %v119
    %v122 = vpop.permute.xlu0 %121
    %vm123 = vcmp.eq.s32.totalorder %v38, %v122
    %vm124 = vcmp.eq.s32.totalorder %v39, %v122
    %vm125 = vcmp.eq.s32.totalorder %v40, %v122
    %v126 = vsel %vm123, 1, 0
    %v127 = vsel %vm124, 1, 0
    %v128 = vsel %vm125, 1, 0
    %v129 = vcvt.s32.f32 %v126
    %v130 = vcvt.s32.f32 %v127
    %v131 = vcvt.s32.f32 %v128
    %v132 = vadd.f32 %v116, %v129
    %v133 = vadd.f32 %v117, %v130
    %v134 = vadd.f32 %v118, %v131
    %v135 = vadd.s32 %v36, 320
    %136 = vset.pattern.permute.xlu0 6
    %137 = vperm.xlu0 %136, %v135
    %v138 = vpop.permute.xlu0 %137
    %vm139 = vcmp.eq.s32.totalorder %v38, %v138
    %vm140 = vcmp.eq.s32.totalorder %v39, %v138
    %vm141 = vcmp.eq.s32.totalorder %v40, %v138
    %v142 = vsel %vm139, 1, 0
    %v143 = vsel %vm140, 1, 0
    %v144 = vsel %vm141, 1, 0
    %v145 = vcvt.s32.f32 %v142
    %v146 = vcvt.s32.f32 %v143
    %v147 = vcvt.s32.f32 %v144
    %v148 = vadd.f32 %v132, %v145
    %v149 = vadd.f32 %v133, %v146
    %v150 = vadd.f32 %v134, %v147
    %v151 = vpack.c.bf16 %v148, %v148
    %v152 = vpack.c.bf16 %v149, %v149
    %v153 = vpack.c.bf16 %v150, %v150
    %v154 = vld [vmem:[%s4] sm:$0xff]
    %v155 = vld [vmem:[%s4 + $0x8] sm:$0xff]
    %v156 = vld [vmem:[%s4 + $0x10] sm:$0xff]
    %v157 = vld [vmem:[%s4 + $0x18] sm:$0xff]
    %v158 = vld [vmem:[%s4 + $0x20] sm:$0xff]
    %v159 = vld [vmem:[%s4 + $0x28] sm:$0xff]
    %v160 = vld [vmem:[%s4 + $0x30] sm:$0xff]
    %v161 = vld [vmem:[%s4 + $0x38] sm:$0xff]
    %v162 = vld [vmem:[%s4 + $0x40] sm:$0xff]
    %v163 = vld [vmem:[%s4 + $0x48] sm:$0xff]
    %v164 = vld [vmem:[%s4 + $0x50] sm:$0xff]
    %v165 = vld [vmem:[%s4 + $0x58] sm:$0xff]
    %v166 = vld [vmem:[%s4 + $0x60] sm:$0xff]
    %v167 = vld [vmem:[%s4 + $0x68] sm:$0xff]
    %v168 = vld [vmem:[%s4 + $0x70] sm:$0xff]
    %v169 = vld [vmem:[%s4 + $0x78] sm:$0xff]
    %v170 = vld [vmem:[%s4 + $0x80] sm:$0xff]
    %v171 = vld [vmem:[%s4 + $0x88] sm:$0xff]
    %v172 = vld [vmem:[%s4 + $0x90] sm:$0xff]
    %v173 = vld [vmem:[%s4 + $0x98] sm:$0xff]
    %v174 = vld [vmem:[%s4 + $0xa0] sm:$0xff]
    %v175 = vld [vmem:[%s4 + $0xa8] sm:$0xff]
    %v176 = vld [vmem:[%s4 + $0xb0] sm:$0xff]
    %v177 = vld [vmem:[%s4 + $0xb8] sm:$0xff]
    %v178 = vld [vmem:[%s4 + $0xc0] sm:$0xff]
    %v179 = vld [vmem:[%s4 + $0xc8] sm:$0xff]
    %v180 = vld [vmem:[%s4 + $0xd0] sm:$0xff]
    %v181 = vld [vmem:[%s4 + $0xd8] sm:$0xff]
    %v182 = vld [vmem:[%s4 + $0xe0] sm:$0xff]
    %v183 = vld [vmem:[%s4 + $0xe8] sm:$0xff]
    %v184 = vld [vmem:[%s4 + $0xf0] sm:$0xff]
    %v185 = vld [vmem:[%s4 + $0xf8] sm:$0xff]
    %v186 = vld [vmem:[%s4 + $0x100] sm:$0xff]
    %v187 = vld [vmem:[%s4 + $0x108] sm:$0xff]
    %v188 = vld [vmem:[%s4 + $0x110] sm:$0xff]
    %v189 = vld [vmem:[%s4 + $0x118] sm:$0xff]
    %v190 = vld [vmem:[%s4 + $0x120] sm:$0xff]
    %v191 = vld [vmem:[%s4 + $0x128] sm:$0xff]
    %v192 = vld [vmem:[%s4 + $0x130] sm:$0xff]
    %v193 = vld [vmem:[%s4 + $0x138] sm:$0xff]
    %v194 = vld [vmem:[%s4 + $0x140] sm:$0xff]
    %v195 = vld [vmem:[%s4 + $0x148] sm:$0xff]
    %v196 = vld [vmem:[%s4 + $0x150] sm:$0xff]
    %v197 = vld [vmem:[%s4 + $0x158] sm:$0xff]
    %v198 = vld [vmem:[%s4 + $0x160] sm:$0xff]
    %v199 = vld [vmem:[%s4 + $0x168] sm:$0xff]
    %v200 = vld [vmem:[%s4 + $0x170] sm:$0xff]
    %v201 = vld [vmem:[%s4 + $0x178] sm:$0xff]
    %v250 = vunpack.c.l.b16 %v154
    %v251 = vunpack.c.h.b16 %v154
    %v252 = vunpack.c.l.b16 %v155
    %v253 = vunpack.c.h.b16 %v155
    %v254 = vunpack.c.l.b16 %v156
    %v255 = vunpack.c.h.b16 %v156
    %v256 = vunpack.c.l.b16 %v157
    %v257 = vunpack.c.h.b16 %v157
    %v258 = vunpack.c.l.b16 %v158
    %v259 = vunpack.c.h.b16 %v158
    %v260 = vunpack.c.l.b16 %v159
    %v261 = vunpack.c.h.b16 %v159
    %v262 = vunpack.c.l.b16 %v160
    %v263 = vunpack.c.h.b16 %v160
    %v264 = vunpack.c.l.b16 %v161
    %v265 = vunpack.c.h.b16 %v161
    %v266 = vunpack.c.l.b16 %v162
    %v267 = vunpack.c.h.b16 %v162
    %v268 = vunpack.c.l.b16 %v163
    %v269 = vunpack.c.h.b16 %v163
    %v270 = vunpack.c.l.b16 %v164
    %v271 = vunpack.c.h.b16 %v164
    %v272 = vunpack.c.l.b16 %v165
    %v273 = vunpack.c.h.b16 %v165
    %v274 = vunpack.c.l.b16 %v166
    %v275 = vunpack.c.h.b16 %v166
    %v276 = vunpack.c.l.b16 %v167
    %v277 = vunpack.c.h.b16 %v167
    %v278 = vunpack.c.l.b16 %v168
    %v279 = vunpack.c.h.b16 %v168
    %v280 = vunpack.c.l.b16 %v169
    %v281 = vunpack.c.h.b16 %v169
    %v282 = vunpack.c.l.b16 %v170
    %v283 = vunpack.c.h.b16 %v170
    %v284 = vunpack.c.l.b16 %v171
    %v285 = vunpack.c.h.b16 %v171
    %v286 = vunpack.c.l.b16 %v172
    %v287 = vunpack.c.h.b16 %v172
    %v288 = vunpack.c.l.b16 %v173
    %v289 = vunpack.c.h.b16 %v173
    %v290 = vunpack.c.l.b16 %v174
    %v291 = vunpack.c.h.b16 %v174
    %v292 = vunpack.c.l.b16 %v175
    %v293 = vunpack.c.h.b16 %v175
    %v294 = vunpack.c.l.b16 %v176
    %v295 = vunpack.c.h.b16 %v176
    %v296 = vunpack.c.l.b16 %v177
    %v297 = vunpack.c.h.b16 %v177
    %v298 = vunpack.c.l.b16 %v178
    %v299 = vunpack.c.h.b16 %v178
    %v300 = vunpack.c.l.b16 %v179
    %v301 = vunpack.c.h.b16 %v179
    %v302 = vunpack.c.l.b16 %v180
    %v303 = vunpack.c.h.b16 %v180
    %v304 = vunpack.c.l.b16 %v181
    %v305 = vunpack.c.h.b16 %v181
    %v306 = vunpack.c.l.b16 %v182
    %v307 = vunpack.c.h.b16 %v182
    %v308 = vunpack.c.l.b16 %v183
    %v309 = vunpack.c.h.b16 %v183
    %v310 = vunpack.c.l.b16 %v184
    %v311 = vunpack.c.h.b16 %v184
    %v312 = vunpack.c.l.b16 %v185
    %v313 = vunpack.c.h.b16 %v185
    %v314 = vunpack.c.l.b16 %v186
    %v315 = vunpack.c.h.b16 %v186
    %v316 = vunpack.c.l.b16 %v187
    %v317 = vunpack.c.h.b16 %v187
    %v318 = vunpack.c.l.b16 %v188
    %v319 = vunpack.c.h.b16 %v188
    %v320 = vunpack.c.l.b16 %v189
    %v321 = vunpack.c.h.b16 %v189
    %v322 = vunpack.c.l.b16 %v190
    %v323 = vunpack.c.h.b16 %v190
    %v324 = vunpack.c.l.b16 %v191
    %v325 = vunpack.c.h.b16 %v191
    %v326 = vunpack.c.l.b16 %v192
    %v327 = vunpack.c.h.b16 %v192
    %v328 = vunpack.c.l.b16 %v193
    %v329 = vunpack.c.h.b16 %v193
    %v330 = vunpack.c.l.b16 %v194
    %v331 = vunpack.c.h.b16 %v194
    %v332 = vunpack.c.l.b16 %v195
    %v333 = vunpack.c.h.b16 %v195
    %v334 = vunpack.c.l.b16 %v196
    %v335 = vunpack.c.h.b16 %v196
    %v336 = vunpack.c.l.b16 %v197
    %v337 = vunpack.c.h.b16 %v197
    %v338 = vunpack.c.l.b16 %v198
    %v339 = vunpack.c.h.b16 %v198
    %v340 = vunpack.c.l.b16 %v199
    %v341 = vunpack.c.h.b16 %v199
    %v342 = vunpack.c.l.b16 %v200
    %v343 = vunpack.c.h.b16 %v200
    %v344 = vunpack.c.l.b16 %v201
    %v345 = vunpack.c.h.b16 %v201
    %v346 = vpack.c.b16 %v252, %v250
    %v347 = vpack.c.b16 %v253, %v251
    %v348 = vpack.c.b16 %v256, %v254
    %v349 = vpack.c.b16 %v257, %v255
    %v350 = vpack.c.b16 %v260, %v258
    %v351 = vpack.c.b16 %v261, %v259
    %v352 = vpack.c.b16 %v264, %v262
    %v353 = vpack.c.b16 %v265, %v263
    %v354 = vpack.c.b16 %v268, %v266
    %v355 = vpack.c.b16 %v269, %v267
    %v356 = vpack.c.b16 %v272, %v270
    %v357 = vpack.c.b16 %v273, %v271
    %v358 = vpack.c.b16 %v276, %v274
    %v359 = vpack.c.b16 %v277, %v275
    %v360 = vpack.c.b16 %v280, %v278
    %v361 = vpack.c.b16 %v281, %v279
    %v362 = vpack.c.b16 %v284, %v282
    %v363 = vpack.c.b16 %v285, %v283
    %v364 = vpack.c.b16 %v288, %v286
    %v365 = vpack.c.b16 %v289, %v287
    %v366 = vpack.c.b16 %v292, %v290
    %v367 = vpack.c.b16 %v293, %v291
    %v368 = vpack.c.b16 %v296, %v294
    %v369 = vpack.c.b16 %v297, %v295
    %v370 = vpack.c.b16 %v300, %v298
    %v371 = vpack.c.b16 %v301, %v299
    %v372 = vpack.c.b16 %v304, %v302
    %v373 = vpack.c.b16 %v305, %v303
    %v374 = vpack.c.b16 %v308, %v306
    %v375 = vpack.c.b16 %v309, %v307
    %v376 = vpack.c.b16 %v312, %v310
    %v377 = vpack.c.b16 %v313, %v311
    %v378 = vpack.c.b16 %v316, %v314
    %v379 = vpack.c.b16 %v317, %v315
    %v380 = vpack.c.b16 %v320, %v318
    %v381 = vpack.c.b16 %v321, %v319
    %v382 = vpack.c.b16 %v324, %v322
    %v383 = vpack.c.b16 %v325, %v323
    %v384 = vpack.c.b16 %v328, %v326
    %v385 = vpack.c.b16 %v329, %v327
    %v386 = vpack.c.b16 %v332, %v330
    %v387 = vpack.c.b16 %v333, %v331
    %v388 = vpack.c.b16 %v336, %v334
    %v389 = vpack.c.b16 %v337, %v335
    %v390 = vpack.c.b16 %v340, %v338
    %v391 = vpack.c.b16 %v341, %v339
    %v392 = vpack.c.b16 %v344, %v342
    %v393 = vpack.c.b16 %v345, %v343
    %442 = vmatprep.subr.bf16.mxu0 %v347
    %443 = vmatpush1.bf16.msra.mxu0 %v346
    %444 = vmatprep.subr.bf16.mxu0 %v349
    %445 = vmatpush1.bf16.msra.mxu0 %v348
    %446 = vmatprep.subr.bf16.mxu0 %v351
    %447 = vmatpush1.bf16.msra.mxu0 %v350
    %448 = vmatprep.subr.bf16.mxu0 %v353
    %449 = vmatpush1.bf16.msra.mxu0 %v352
    %450 = vmatprep.subr.bf16.mxu0 %v355
    %451 = vmatpush1.bf16.msra.mxu0 %v354
    %452 = vmatprep.subr.bf16.mxu0 %v357
    %453 = vmatpush1.bf16.msra.mxu0 %v356
    %454 = vmatprep.subr.bf16.mxu0 %v359
    %455 = vmatpush1.bf16.msra.mxu0 %v358
    %456 = vmatprep.subr.bf16.mxu0 %v361
    %457 = vmatpush1.bf16.msra.mxu0 %v360
    %458 = vmatprep.subr.bf16.mxu0 %v363
    %459 = vmatpush1.bf16.msra.mxu0 %v362
    %460 = vmatprep.subr.bf16.mxu0 %v365
    %461 = vmatpush1.bf16.msra.mxu0 %v364
    %462 = vmatprep.subr.bf16.mxu0 %v367
    %463 = vmatpush1.bf16.msra.mxu0 %v366
    %464 = vmatprep.subr.bf16.mxu0 %v369
    %465 = vmatpush1.bf16.msra.mxu0 %v368
    %466 = vmatprep.subr.bf16.mxu0 %v371
    %467 = vmatpush1.bf16.msra.mxu0 %v370
    %468 = vmatprep.subr.bf16.mxu0 %v373
    %469 = vmatpush1.bf16.msra.mxu0 %v372
    %470 = vmatprep.subr.bf16.mxu0 %v375
    %471 = vmatpush1.bf16.msra.mxu0 %v374
    %472 = vmatprep.subr.bf16.mxu0 %v377
    %473 = vmatpush1.bf16.msra.mxu0 %v376
    %474 = vmatprep.mubr.bf16.mxu0 %v152
    %475 = vmatmul.mubr.bf16.gmra.mrb[0].mxu0 %v151
    %v476 = vpop.f32.mrb[0].mxu0
    %v477 = vadd.f32 0.0, %v476
    %v478 = vpop.f32.mrb[0].mxu0
    %v479 = vadd.f32 0.0, %v478
    %v480 = vpop.f32.mrb[0].mxu0
    %v481 = vpop.f32.mrb[0].mxu0
    %482 = vdwg.mxu0
    %483 = vmatprep.subr.bf16.mxu0 %v379
    %484 = vmatpush1.bf16.msra.mxu0 %v378
    %485 = vmatprep.subr.bf16.mxu0 %v381
    %486 = vmatpush1.bf16.msra.mxu0 %v380
    %487 = vmatprep.subr.bf16.mxu0 %v383
    %488 = vmatpush1.bf16.msra.mxu0 %v382
    %489 = vmatprep.subr.bf16.mxu0 %v385
    %490 = vmatpush1.bf16.msra.mxu0 %v384
    %491 = vmatprep.subr.bf16.mxu0 %v387
    %492 = vmatpush1.bf16.msra.mxu0 %v386
    %493 = vmatprep.subr.bf16.mxu0 %v389
    %494 = vmatpush1.bf16.msra.mxu0 %v388
    %495 = vmatprep.subr.bf16.mxu0 %v391
    %496 = vmatpush1.bf16.msra.mxu0 %v390
    %497 = vmatprep.subr.bf16.mxu0 %v393
    %498 = vmatpush1.bf16.msra.mxu0 %v392
    %499 = vmatprep.subr.bf16.mxu0 0
    %500 = vmatpush1.bf16.msra.mxu0 0
    %501 = vmatprep.subr.bf16.mxu0 0
    %502 = vmatpush1.bf16.msra.mxu0 0
    %503 = vmatprep.subr.bf16.mxu0 0
    %504 = vmatpush1.bf16.msra.mxu0 0
    %505 = vmatprep.subr.bf16.mxu0 0
    %506 = vmatpush1.bf16.msra.mxu0 0
    %507 = vmatprep.subr.bf16.mxu0 0
    %508 = vmatpush1.bf16.msra.mxu0 0
    %509 = vmatprep.subr.bf16.mxu0 0
    %510 = vmatpush1.bf16.msra.mxu0 0
    %511 = vmatprep.subr.bf16.mxu0 0
    %512 = vmatpush1.bf16.msra.mxu0 0
    %513 = vmatprep.subr.bf16.mxu0 0
    %514 = vmatpush1.bf16.msra.mxu0 0
    %515 = vmatprep.mubr.bf16.mxu0 0
    %516 = vmatmul.mubr.bf16.gmra.mrb[0].mxu0 %v153
    %v517 = vpop.f32.mrb[0].mxu0
    %v518 = vadd.f32 %v477, %v517
    %v519 = vpop.f32.mrb[0].mxu0
    %v520 = vadd.f32 %v479, %v519
    %v521 = vpop.f32.mrb[0].mxu0
    %v522 = vpop.f32.mrb[0].mxu0
    %523 = vdwg.mxu0
    %v524 = vld [vmem:[%s1] sm:$0xff]
    %526 = vrot.lane.b32.xlu0 %v524, 64
    %v527 = vpop.permute.xlu0 %526
    %vm529 = vcmask 523264
    %v530 = vsel %vm529, %v520, %v527
    %v531 = vadd.f32 %v518, %v530
    %532 = vadd.xlane.f32.xlu0 %v531
    %v533 = vpop.xlane.xlu0 %532
    %v534 = vmul.f32 %v533, 0.004901961
    %v535 = vmul.f32 %v518, %v518
    %v536 = vmul.f32 %v530, %v530
    %v537 = vadd.f32 %v535, %v536
    %538 = vadd.xlane.f32.xlu0 %v537
    %v539 = vpop.xlane.xlu0 %538
    %v540 = vmul.f32 %v539, 0.004901961
    %v541 = vmul.f32 %v534, %v534
    %v542 = vsub.f32 %v540, %v541
    %v543 = vmax.f32 %v542, 0.0
    %v544 = vsub.f32 %v518, %v534
    %v545 = vsub.f32 %v530, %v534
    %v546 = vadd.f32 %v543, 1e-05
    %v547 = vrsqrt.pop %v546
    %v548 = vmul.f32 %v544, %v547
    %v549 = vmul.f32 %v545, %v547
    %v550 = vld [vmem:[%s2] sm:$0x3]
    %v552 = vlaneseq
    %v553 = vshrl.u32 %v552, 7
    %v554 = vsub.s32 0, %v553
    %v555 = vrot.slane %v550, %v554
    %v556 = vlaneseq
    %v557 = vshrl.u32 %v556, 7
    %v558 = vsub.s32 1, %v557
    %v559 = vrot.slane %v550, %v558
    %v562 = vmul.f32 %v548, %v555
    %v563 = vmul.f32 %v549, %v559
    %v564 = vld [vmem:[%s3] sm:$0x3]
    %v566 = vlaneseq
    %v567 = vshrl.u32 %v566, 7
    %v568 = vsub.s32 0, %v567
    %v569 = vrot.slane %v564, %v568
    %v570 = vlaneseq
    %v571 = vshrl.u32 %v570, 7
    %v572 = vsub.s32 1, %v571
    %v573 = vrot.slane %v564, %v572
    %v576 = vadd.f32 %v562, %v569
    %v577 = vadd.f32 %v563, %v573
    %v578 = vpack.c.bf16 %v576, %v576
    %v579 = vpack.c.bf16 %v577, %v577
    %v580 = vld [vmem:[%s5] sm:$0xf]
    %v581 = vld [vmem:[%s5 + $0x4] sm:$0xf]
    %v582 = vld [vmem:[%s5 + $0x8] sm:$0xf]
    %v583 = vld [vmem:[%s5 + $0xc] sm:$0xf]
    %v584 = vld [vmem:[%s5 + $0x10] sm:$0xf]
    %v585 = vld [vmem:[%s5 + $0x14] sm:$0xf]
    %v586 = vld [vmem:[%s5 + $0x18] sm:$0xf]
    %v587 = vld [vmem:[%s5 + $0x1c] sm:$0xf]
    %v588 = vld [vmem:[%s5 + $0x20] sm:$0xf]
    %v589 = vld [vmem:[%s5 + $0x24] sm:$0xf]
    %v590 = vld [vmem:[%s5 + $0x28] sm:$0xf]
    %v591 = vld [vmem:[%s5 + $0x2c] sm:$0xf]
    %v592 = vld [vmem:[%s5 + $0x30] sm:$0xf]
    %v593 = vld [vmem:[%s5 + $0x34] sm:$0xf]
    %v594 = vld [vmem:[%s5 + $0x38] sm:$0xf]
    %v595 = vld [vmem:[%s5 + $0x3c] sm:$0xf]
    %v596 = vld [vmem:[%s5 + $0x40] sm:$0xf]
    %v597 = vld [vmem:[%s5 + $0x44] sm:$0xf]
    %v598 = vld [vmem:[%s5 + $0x48] sm:$0xf]
    %v599 = vld [vmem:[%s5 + $0x4c] sm:$0xf]
    %v600 = vld [vmem:[%s5 + $0x50] sm:$0xf]
    %v601 = vld [vmem:[%s5 + $0x54] sm:$0xf]
    %v602 = vld [vmem:[%s5 + $0x58] sm:$0xf]
    %v603 = vld [vmem:[%s5 + $0x5c] sm:$0xf]
    %v604 = vld [vmem:[%s5 + $0x60] sm:$0xf]
    %v605 = vld [vmem:[%s5 + $0x64] sm:$0xf]
    %v606 = vld [vmem:[%s5 + $0x68] sm:$0xf]
    %v607 = vld [vmem:[%s5 + $0x6c] sm:$0xf]
    %v608 = vld [vmem:[%s5 + $0x70] sm:$0xf]
    %v609 = vld [vmem:[%s5 + $0x74] sm:$0xf]
    %v610 = vld [vmem:[%s5 + $0x78] sm:$0xf]
    %v611 = vld [vmem:[%s5 + $0x7c] sm:$0xf]
    %v612 = vld [vmem:[%s6] sm:$0x1]
    %v614 = vlaneseq
    %v615 = vshrl.u32 %v614, 7
    %v616 = vsub.s32 0, %v615
    %v617 = vrot.slane %v612, %v616
    %v651 = vunpack.c.l.b16 %v580
    %v652 = vunpack.c.l.b16 %v581
    %v653 = vunpack.c.l.b16 %v582
    %v654 = vunpack.c.l.b16 %v583
    %v655 = vunpack.c.l.b16 %v584
    %v656 = vunpack.c.l.b16 %v585
    %v657 = vunpack.c.l.b16 %v586
    %v658 = vunpack.c.l.b16 %v587
    %v659 = vunpack.c.l.b16 %v588
    %v660 = vunpack.c.l.b16 %v589
    %v661 = vunpack.c.l.b16 %v590
    %v662 = vunpack.c.l.b16 %v591
    %v663 = vunpack.c.l.b16 %v592
    %v664 = vunpack.c.l.b16 %v593
    %v665 = vunpack.c.l.b16 %v594
    %v666 = vunpack.c.l.b16 %v595
    %v667 = vunpack.c.l.b16 %v596
    %v668 = vunpack.c.l.b16 %v597
    %v669 = vunpack.c.l.b16 %v598
    %v670 = vunpack.c.l.b16 %v599
    %v671 = vunpack.c.l.b16 %v600
    %v672 = vunpack.c.l.b16 %v601
    %v673 = vunpack.c.l.b16 %v602
    %v674 = vunpack.c.l.b16 %v603
    %v675 = vunpack.c.l.b16 %v604
    %v676 = vunpack.c.l.b16 %v605
    %v677 = vunpack.c.l.b16 %v606
    %v678 = vunpack.c.l.b16 %v607
    %v679 = vunpack.c.l.b16 %v608
    %v680 = vunpack.c.l.b16 %v609
    %v681 = vunpack.c.l.b16 %v610
    %v682 = vunpack.c.l.b16 %v611
    %v683 = vpack.c.b16 %v652, %v651
    %v684 = vpack.c.b16 %v654, %v653
    %v685 = vpack.c.b16 %v656, %v655
    %v686 = vpack.c.b16 %v658, %v657
    %v687 = vpack.c.b16 %v660, %v659
    %v688 = vpack.c.b16 %v662, %v661
    %v689 = vpack.c.b16 %v664, %v663
    %v690 = vpack.c.b16 %v666, %v665
    %v691 = vpack.c.b16 %v668, %v667
    %v692 = vpack.c.b16 %v670, %v669
    %v693 = vpack.c.b16 %v672, %v671
    %v694 = vpack.c.b16 %v674, %v673
    %v695 = vpack.c.b16 %v676, %v675
    %v696 = vpack.c.b16 %v678, %v677
    %v697 = vpack.c.b16 %v680, %v679
    %v698 = vpack.c.b16 %v682, %v681
    %715 = vmatprep.subr.bf16.mxu0 0
    %716 = vmatpush1.bf16.msra.mxu0 %v683
    %717 = vmatprep.subr.bf16.mxu0 0
    %718 = vmatpush1.bf16.msra.mxu0 %v684
    %719 = vmatprep.subr.bf16.mxu0 0
    %720 = vmatpush1.bf16.msra.mxu0 %v685
    %721 = vmatprep.subr.bf16.mxu0 0
    %722 = vmatpush1.bf16.msra.mxu0 %v686
    %723 = vmatprep.subr.bf16.mxu0 0
    %724 = vmatpush1.bf16.msra.mxu0 %v687
    %725 = vmatprep.subr.bf16.mxu0 0
    %726 = vmatpush1.bf16.msra.mxu0 %v688
    %727 = vmatprep.subr.bf16.mxu0 0
    %728 = vmatpush1.bf16.msra.mxu0 %v689
    %729 = vmatprep.subr.bf16.mxu0 0
    %730 = vmatpush1.bf16.msra.mxu0 %v690
    %731 = vmatprep.subr.bf16.mxu0 0
    %732 = vmatpush1.bf16.msra.mxu0 %v691
    %733 = vmatprep.subr.bf16.mxu0 0
    %734 = vmatpush1.bf16.msra.mxu0 %v692
    %735 = vmatprep.subr.bf16.mxu0 0
    %736 = vmatpush1.bf16.msra.mxu0 %v693
    %737 = vmatprep.subr.bf16.mxu0 0
    %738 = vmatpush1.bf16.msra.mxu0 %v694
    %739 = vmatprep.subr.bf16.mxu0 0
    %740 = vmatpush1.bf16.msra.mxu0 %v695
    %741 = vmatprep.subr.bf16.mxu0 0
    %742 = vmatpush1.bf16.msra.mxu0 %v696
    %743 = vmatprep.subr.bf16.mxu0 0
    %744 = vmatpush1.bf16.msra.mxu0 %v697
    %745 = vmatprep.subr.bf16.mxu0 0
    %746 = vmatpush1.bf16.msra.mxu0 %v698
    %747 = vmatprep.mubr.bf16.mxu0 %v579
    %748 = vmatmul.mubr.bf16.gmra.mrb[0].mxu0 %v578
    %v749 = vpop.f32.mrb[0].mxu0
    %v750 = vadd.f32 %v617, %v749
    %v751 = vpop.f32.mrb[0].mxu0
    %v752 = vpop.f32.mrb[0].mxu0
    %v753 = vpop.f32.mrb[0].mxu0
    %754 = vdwg.mxu0
    %v755 = vmax.f32 %v750, 0.0
    %v756 = vpack.c.bf16 %v755, %v755
    %v757 = vld [vmem:[%s7] sm:$0xf]
    %v758 = vld [vmem:[%s7 + $0x4] sm:$0xf]
    %v759 = vld [vmem:[%s7 + $0x8] sm:$0xf]
    %v760 = vld [vmem:[%s7 + $0xc] sm:$0xf]
    %v761 = vld [vmem:[%s7 + $0x10] sm:$0xf]
    %v762 = vld [vmem:[%s7 + $0x14] sm:$0xf]
    %v763 = vld [vmem:[%s7 + $0x18] sm:$0xf]
    %v764 = vld [vmem:[%s7 + $0x1c] sm:$0xf]
    %v765 = vld [vmem:[%s7 + $0x20] sm:$0xf]
    %v766 = vld [vmem:[%s7 + $0x24] sm:$0xf]
    %v767 = vld [vmem:[%s7 + $0x28] sm:$0xf]
    %v768 = vld [vmem:[%s7 + $0x2c] sm:$0xf]
    %v769 = vld [vmem:[%s7 + $0x30] sm:$0xf]
    %v770 = vld [vmem:[%s7 + $0x34] sm:$0xf]
    %v771 = vld [vmem:[%s7 + $0x38] sm:$0xf]
    %v772 = vld [vmem:[%s7 + $0x3c] sm:$0xf]
    %v773 = vld [vmem:[%s8] sm:$0x1]
    %v775 = vlaneseq
    %v776 = vshrl.u32 %v775, 7
    %v777 = vsub.s32 0, %v776
    %v778 = vrot.slane %v773, %v777
    %v796 = vunpack.c.l.b16 %v757
    %v797 = vunpack.c.l.b16 %v758
    %v798 = vunpack.c.l.b16 %v759
    %v799 = vunpack.c.l.b16 %v760
    %v800 = vunpack.c.l.b16 %v761
    %v801 = vunpack.c.l.b16 %v762
    %v802 = vunpack.c.l.b16 %v763
    %v803 = vunpack.c.l.b16 %v764
    %v804 = vunpack.c.l.b16 %v765
    %v805 = vunpack.c.l.b16 %v766
    %v806 = vunpack.c.l.b16 %v767
    %v807 = vunpack.c.l.b16 %v768
    %v808 = vunpack.c.l.b16 %v769
    %v809 = vunpack.c.l.b16 %v770
    %v810 = vunpack.c.l.b16 %v771
    %v811 = vunpack.c.l.b16 %v772
    %v812 = vpack.c.b16 %v797, %v796
    %v813 = vpack.c.b16 %v799, %v798
    %v814 = vpack.c.b16 %v801, %v800
    %v815 = vpack.c.b16 %v803, %v802
    %v816 = vpack.c.b16 %v805, %v804
    %v817 = vpack.c.b16 %v807, %v806
    %v818 = vpack.c.b16 %v809, %v808
    %v819 = vpack.c.b16 %v811, %v810
    %828 = vmatprep.subr.bf16.mxu0 0
    %829 = vmatpush1.bf16.msra.mxu0 %v812
    %830 = vmatprep.subr.bf16.mxu0 0
    %831 = vmatpush1.bf16.msra.mxu0 %v813
    %832 = vmatprep.subr.bf16.mxu0 0
    %833 = vmatpush1.bf16.msra.mxu0 %v814
    %834 = vmatprep.subr.bf16.mxu0 0
    %835 = vmatpush1.bf16.msra.mxu0 %v815
    %836 = vmatprep.subr.bf16.mxu0 0
    %837 = vmatpush1.bf16.msra.mxu0 %v816
    %838 = vmatprep.subr.bf16.mxu0 0
    %839 = vmatpush1.bf16.msra.mxu0 %v817
    %840 = vmatprep.subr.bf16.mxu0 0
    %841 = vmatpush1.bf16.msra.mxu0 %v818
    %842 = vmatprep.subr.bf16.mxu0 0
    %843 = vmatpush1.bf16.msra.mxu0 %v819
    %844 = vmatprep.subr.bf16.mxu0 0
    %845 = vmatpush1.bf16.msra.mxu0 0
    %846 = vmatprep.subr.bf16.mxu0 0
    %847 = vmatpush1.bf16.msra.mxu0 0
    %848 = vmatprep.subr.bf16.mxu0 0
    %849 = vmatpush1.bf16.msra.mxu0 0
    %850 = vmatprep.subr.bf16.mxu0 0
    %851 = vmatpush1.bf16.msra.mxu0 0
    %852 = vmatprep.subr.bf16.mxu0 0
    %853 = vmatpush1.bf16.msra.mxu0 0
    %854 = vmatprep.subr.bf16.mxu0 0
    %855 = vmatpush1.bf16.msra.mxu0 0
    %856 = vmatprep.subr.bf16.mxu0 0
    %857 = vmatpush1.bf16.msra.mxu0 0
    %858 = vmatprep.subr.bf16.mxu0 0
    %859 = vmatpush1.bf16.msra.mxu0 0
    %860 = vmatprep.mubr.bf16.mxu0 0
    %861 = vmatmul.mubr.bf16.gmra.mrb[0].mxu0 %v756
    %v862 = vpop.f32.mrb[0].mxu0
    %v863 = vadd.f32 %v778, %v862
    %v864 = vpop.f32.mrb[0].mxu0
    %v865 = vpop.f32.mrb[0].mxu0
    %v866 = vpop.f32.mrb[0].mxu0
    %867 = vdwg.mxu0
    %v868 = vmax.f32 %v863, 0.0
    %869 = vst [vmem:[#allocation2] sm:$0xff] %v868
    // Predicated region
    $region38: #{mpm_flat_forward.1} parent=1 // pred_check
      _
    $region39: #{mpm_flat_forward.1} parent=1 // pred_check_branch
      %871 = sbr.rel (0) target = $region41
    $region40: #{mpm_flat_forward.1} parent=1 // pred_region
      %s873 = ssub.s32 128, 128
      %874 = vsyncadd [#allocation3], %s873
      %s876 = sshll.u32 [#allocation2], 4
      %s877 = int_to_ptr.vmem [resolvable:$true] %s876
      %879 = dma.vmem_to_hbm [thread:$0]  %s877, 128, %s9, [#allocation3]
    $region41: #{mpm_flat_forward.1} parent=1 // pred_fallthru
      _
    // Predicated region
    $region42: #{mpm_flat_forward.1} parent=1 // pred_check
      _
    $region43: #{mpm_flat_forward.1} parent=1 // pred_check_branch
      %881 = sbr.rel (0) target = $region45
    $region44: #{mpm_flat_forward.1} parent=1 // pred_region
      %882 = dma.done [#allocation3], 128
    $region45: #{mpm_flat_forward.1} parent=1 // pred_fallthru
      _
    %883 = vsyncpa [#allocation3], 1

</llo_original>
